<compile_context>
chip_gen: v7x
topology: tpu7x:2x2x1
jax: 0.10.0
libtpu: 0.0.40
codegen_flags: <defaults>
</compile_context>

<pallas_src>
import jax
import jax.numpy as jnp
from jax import lax
from jax.experimental import pallas as pl
from jax.experimental.pallas import tpu as pltpu

KH = KW = 3  # 3x3 conv, padding=1 (SAME)


def conv_kernel(x_ref, bmat_ref, bias_ref, o_ref, xpad_ref):
    """One grid step processes a block of NB flattened-batch images.

    x_ref   : (NB, H, Cin*W)        channel-packed input block
    bmat_ref: (KH, Cin*W, W*Cout)   block-Toeplitz weights (W-conv + Cin folded in)
    bias_ref: (1, W*Cout)           bias tiled to the packed lane layout
    o_ref   : (NB*H, W*Cout)        lane-dense packed output (128 lanes)
    xpad_ref: (NB, H+2, Cin*W)      VMEM scratch, H-zero-padded activations
    """
    NB, H, CW = x_ref.shape
    M, L = o_ref.shape

    # In-kernel zero padding of the H dim (replaces a jnp.pad HBM pass).
    xpad_ref[...] = jnp.zeros_like(xpad_ref)
    xpad_ref[:, 1:1 + H, :] = x_ref[...].astype(jnp.float32)

    # Accumulate in registers; init with the bias broadcast (hoisted once).
    acc = jnp.broadcast_to(bias_ref[...].astype(jnp.float32), (M, L))

    # KH matmuls: (NB*H, Cin*W) @ (Cin*W, W*Cout).  The W-direction conv, its
    # zero padding and the Cin contraction are all baked into bmat, so there is
    # no im2col; contraction dim is Cin*W = 64 per tap.
    for ky in range(KH):
        lhs = xpad_ref[:, ky:ky + H, :].reshape(M, CW)
        acc = acc + jnp.dot(lhs, bmat_ref[ky],
                            preferred_element_type=jnp.float32)

    o_ref[...] = acc.astype(o_ref.dtype)


def conv3x3_same_pallas(x_nchw, w_hwio, bias):
    """SAME 3x3 conv (stride 1, padding 1, + bias) over a flattened NCHW batch."""
    N, Cin, H, Wd = x_nchw.shape
    Cout = w_hwio.shape[-1]
    L = Wd * Cout
    CW = Cin * Wd

    # Bake the W-direction convolution (incl. its zero padding) and the Cin
    # contraction into KH block-Toeplitz matrices (tiny one-time weight prep):
    #   bmat[ky, ci*W + w_src, w_out*Cout + co] = w_hwio[ky, w_src - w_out + 1, ci, co]
    # and 0 where the tap falls outside the 3x3 window.
    w_src = jnp.arange(Wd)[:, None]
    w_out = jnp.arange(Wd)[None, :]
    kx = w_src - w_out + 1
    valid = (kx >= 0) & (kx < KW)
    kx_c = jnp.clip(kx, 0, KW - 1)
    taps = w_hwio[:, kx_c, :, :]                        # (KH, Wsrc, Wout, Cin, Cout)
    taps = jnp.where(valid[None, :, :, None, None], taps, 0.0)
    bmat = jnp.transpose(taps, (0, 3, 1, 2, 4)).reshape(KH, CW, L)
    bmat = bmat.astype(jnp.float32)

    # Bias for packed lane j = w*Cout + co  ->  bias[co].
    bias_tile = jnp.tile(bias.astype(jnp.float32), Wd).reshape(1, L)

    # Channel-pack the input so the per-tap LHS is a contiguous 2-D slab:
    #   x_pack[n, h, ci*W + w] = x[n, ci, h, w].   (One tiny wrapper transpose.)
    x_pack = jnp.transpose(x_nchw, (0, 2, 1, 3)).reshape(N, H, CW)

    # Collapse the grid: at most 2 blocks.  Keeps per-step overhead negligible
    # on v5e/v6e and lets a v7x chip split the blocks across its 2 TCs.
    n_blocks = 2 if (N % 2 == 0 and N >= 2) else 1
    NB = N // n_blocks

    out2d = pl.pallas_call(
        conv_kernel,
        out_shape=jax.ShapeDtypeStruct((N * H, L), x_nchw.dtype),
        grid_spec=pltpu.PrefetchScalarGridSpec(
            num_scalar_prefetch=0,
            grid=(n_blocks,),
            in_specs=[
                # Channel-packed block; last two dims equal the full extents.
                pl.BlockSpec((NB, H, CW), lambda i: (i, 0, 0)),
                # Shared packed weights / bias: same full block every step.
                pl.BlockSpec((KH, CW, L), lambda i: (0, 0, 0)),
                pl.BlockSpec((1, L), lambda i: (0, 0)),
            ],
            # Lane-dense output: last dim W*Cout = 128 -> unmasked full-lane stores.
            out_specs=pl.BlockSpec((NB * H, L), lambda i: (i, 0)),
            scratch_shapes=[pltpu.VMEM((NB, H + 2, CW), jnp.float32)],
        ),
        compiler_params=pltpu.CompilerParams(
            dimension_semantics=("parallel",),
        ),
    )(x_pack, bmat, bias_tile)

    # (N*H, W*Cout) packed result -> NCHW.  The reshape is a free view; only
    # the final transpose touches HBM (needed to return the PyTorch layout).
    return jnp.transpose(out2d.reshape(N, H, Wd, Cout), (0, 3, 1, 2))


def shared_batch_ensemble_forward(x, w_hwio, bias, num_instances):
    """SharedBatchEnsemble.forward with module = Conv2d(Cin->Cout, 3, padding=1).

    x: (num_instances, batch, C_in, H, W)  ->  (num_instances, batch, C_out, H, W)
    """
    ni, b, cin, H, Wd = x.shape
    assert ni == num_instances
    # TODO(synk): the PyTorch module wraps an arbitrary deep-copied nn.Module;
    # here the shared module is specialized to Conv2d(4, 8, 3, padding=1).
    x_flat = x.reshape(ni * b, cin, H, Wd)                 # input.view(-1, *input.shape[2:])
    out_nchw = conv3x3_same_pallas(x_flat, w_hwio, bias)   # self.module(input)
    cout = out_nchw.shape[1]
    return out_nchw.reshape(num_instances, -1, cout, H, Wd)  # out.view(ni, -1, ...)


if __name__ == "__main__":
    num_instances = 2
    batch = 2
    C_in, C_out = 4, 8
    H = W = 16

    key = jax.random.PRNGKey(0)
    k_x, k_w, k_b = jax.random.split(key, 3)

    # nn.Conv2d(4, 8, 3, padding=1) parameters.  PyTorch layout is OIHW; stored
    # here as HWIO for the packed kernel.
    w_hwio = jax.random.normal(k_w, (KH, KW, C_in, C_out), jnp.float32) * 0.1
    bias = jax.random.normal(k_b, (C_out,), jnp.float32) * 0.1
    x = jax.random.normal(k_x, (num_instances, batch, C_in, H, W), jnp.float32)

    fwd = jax.jit(shared_batch_ensemble_forward, static_argnums=(3,))
    out = jax.block_until_ready(fwd(x, w_hwio, bias, num_instances))
    assert out.shape == (num_instances, batch, C_out, H, W), out.shape

    # Pure-JAX reference (identical math to torch.nn.Conv2d with padding=1).
    x_flat = x.reshape(num_instances * batch, C_in, H, W)
    ref = lax.conv_general_dilated(
        x_flat, w_hwio, window_strides=(1, 1), padding="SAME",
        dimension_numbers=("NCHW", "HWIO", "NCHW"),
    ) + bias[None, :, None, None]
    ref = ref.reshape(num_instances, batch, C_out, H, W)

    err = float(jnp.max(jnp.abs(out - ref)))
    assert jnp.allclose(out, ref, atol=1e-4, rtol=1e-4), err
    print("KERNEL_OK")
</pallas_src>

<mosaic_0001>
module attributes {stable_mosaic.version = 11 : i64} {
  func.func @conv_kernel(%arg0: i32, %arg1: memref<2x16x64xf32, #tpu.memory_space<vmem>>, %arg2: memref<3x64x128xf32, #tpu.memory_space<vmem>>, %arg3: memref<1x128xf32, #tpu.memory_space<vmem>>, %arg4: memref<32x128xf32, #tpu.memory_space<vmem>>, %arg5: memref<2x18x64xf32, #tpu.memory_space<vmem>>) attributes {dimension_semantics = [#tpu.dimension_semantics<parallel>], iteration_bounds = array<i64: 2>, scalar_prefetch = 0 : i64, scratch_operands = 1 : i64, tpu.core_type = #tpu.core_type<tc>, window_params = [{transform_indices = @transform_0, window_bounds = array<i64: 2, 16, 64>}, {pipeline_mode = #tpu.pipeline_mode<synchronous>, transform_indices = @transform_1, window_bounds = array<i64: 3, 64, 128>}, {pipeline_mode = #tpu.pipeline_mode<synchronous>, transform_indices = @transform_2, window_bounds = array<i64: 1, 128>}, {transform_indices = @transform_3, window_bounds = array<i64: 32, 128>}]} {
    %cst = arith.constant 0.000000e+00 : f32
    %0 = vector.broadcast %cst : f32 to vector<2x18x64xf32>
    %c0 = arith.constant 0 : index
    %c0_0 = arith.constant 0 : index
    %c0_1 = arith.constant 0 : index
    %1 = vector.load %arg5[%c0, %c0_0, %c0_1] : memref<2x18x64xf32, #tpu.memory_space<vmem>>, vector<2x18x64xf32>
    tpu.vector_store %arg5[%c0, %c0_0, %c0_1], %0 {strides = array<i32>} : memref<2x18x64xf32, #tpu.memory_space<vmem>>, vector<2x18x64xf32>,
    %c0_2 = arith.constant 0 : index
    %c0_3 = arith.constant 0 : index
    %c0_4 = arith.constant 0 : index
    %2 = vector.load %arg1[%c0_2, %c0_3, %c0_4] : memref<2x16x64xf32, #tpu.memory_space<vmem>>, vector<2x16x64xf32>
    %c0_5 = arith.constant 0 : index
    %c1 = arith.constant 1 : index
    %c0_6 = arith.constant 0 : index
    %3 = vector.load %arg5[%c0_5, %c1, %c0_6] : memref<2x18x64xf32, #tpu.memory_space<vmem>>, vector<2x16x64xf32>
    tpu.vector_store %arg5[%c0_5, %c1, %c0_6], %2 {strides = array<i32>} : memref<2x18x64xf32, #tpu.memory_space<vmem>>, vector<2x16x64xf32>,
    %c0_7 = arith.constant 0 : index
    %c0_8 = arith.constant 0 : index
    %4 = vector.load %arg3[%c0_7, %c0_8] : memref<1x128xf32, #tpu.memory_space<vmem>>, vector<1x128xf32>
    %5 = vector.shape_cast %4 : vector<1x128xf32> to vector<1x128xf32>
    %6 = vector.broadcast %5 : vector<1x128xf32> to vector<32x128xf32>
    %c0_9 = arith.constant 0 : index
    %c0_10 = arith.constant 0 : index
    %c0_11 = arith.constant 0 : index
    %7 = vector.load %arg5[%c0_9, %c0_10, %c0_11] : memref<2x18x64xf32, #tpu.memory_space<vmem>>, vector<2x16x64xf32>
    %8 = vector.shape_cast %7 : vector<2x16x64xf32> to vector<32x64xf32>
    %c0_12 = arith.constant 0 : index
    %c0_13 = arith.constant 0 : index
    %c0_14 = arith.constant 0 : index
    %9 = vector.load %arg2[%c0_12, %c0_13, %c0_14] : memref<3x64x128xf32, #tpu.memory_space<vmem>>, vector<1x64x128xf32>
    %10 = vector.shape_cast %9 : vector<1x64x128xf32> to vector<64x128xf32>
    %cst_15 = arith.constant dense<0.000000e+00> : vector<32x128xf32>
    %11 = tpu.matmul %8, %10, %cst_15 {dimension_numbers = #tpu.dot_dimension_numbers<[1], [0], [0], [1], [0, 0, 1, 1], [], []>} : vector<32x64xf32>, vector<64x128xf32>, vector<32x128xf32> -> vector<32x128xf32>
    %12 = arith.addf %6, %11 : vector<32x128xf32>
    %c0_16 = arith.constant 0 : index
    %c1_17 = arith.constant 1 : index
    %c0_18 = arith.constant 0 : index
    %13 = vector.load %arg5[%c0_16, %c1_17, %c0_18] : memref<2x18x64xf32, #tpu.memory_space<vmem>>, vector<2x16x64xf32>
    %14 = vector.shape_cast %13 : vector<2x16x64xf32> to vector<32x64xf32>
    %c1_19 = arith.constant 1 : index
    %c0_20 = arith.constant 0 : index
    %c0_21 = arith.constant 0 : index
    %15 = vector.load %arg2[%c1_19, %c0_20, %c0_21] : memref<3x64x128xf32, #tpu.memory_space<vmem>>, vector<1x64x128xf32>
    %16 = vector.shape_cast %15 : vector<1x64x128xf32> to vector<64x128xf32>
    %cst_22 = arith.constant dense<0.000000e+00> : vector<32x128xf32>
    %17 = tpu.matmul %14, %16, %cst_22 {dimension_numbers = #tpu.dot_dimension_numbers<[1], [0], [0], [1], [0, 0, 1, 1], [], []>} : vector<32x64xf32>, vector<64x128xf32>, vector<32x128xf32> -> vector<32x128xf32>
    %18 = arith.addf %12, %17 : vector<32x128xf32>
    %c0_23 = arith.constant 0 : index
    %c2 = arith.constant 2 : index
    %c0_24 = arith.constant 0 : index
    %19 = vector.load %arg5[%c0_23, %c2, %c0_24] : memref<2x18x64xf32, #tpu.memory_space<vmem>>, vector<2x16x64xf32>
    %20 = vector.shape_cast %19 : vector<2x16x64xf32> to vector<32x64xf32>
    %c2_25 = arith.constant 2 : index
    %c0_26 = arith.constant 0 : index
    %c0_27 = arith.constant 0 : index
    %21 = vector.load %arg2[%c2_25, %c0_26, %c0_27] : memref<3x64x128xf32, #tpu.memory_space<vmem>>, vector<1x64x128xf32>
    %22 = vector.shape_cast %21 : vector<1x64x128xf32> to vector<64x128xf32>
    %cst_28 = arith.constant dense<0.000000e+00> : vector<32x128xf32>
    %23 = tpu.matmul %20, %22, %cst_28 {dimension_numbers = #tpu.dot_dimension_numbers<[1], [0], [0], [1], [0, 0, 1, 1], [], []>} : vector<32x64xf32>, vector<64x128xf32>, vector<32x128xf32> -> vector<32x128xf32>
    %24 = arith.addf %18, %23 : vector<32x128xf32>
    %c0_29 = arith.constant 0 : index
    %c0_30 = arith.constant 0 : index
    %25 = vector.load %arg4[%c0_29, %c0_30] : memref<32x128xf32, #tpu.memory_space<vmem>>, vector<32x128xf32>
    tpu.vector_store %arg4[%c0_29, %c0_30], %24 {strides = array<i32>} : memref<32x128xf32, #tpu.memory_space<vmem>>, vector<32x128xf32>,
    return
  }
  func.func @transform_0(%arg0: i32) -> (i32, i32, i32) {
    %c0_i32 = arith.constant 0 : i32
    %c0_i32_0 = arith.constant 0 : i32
    %c0_i32_1 = arith.constant 0 : i32
    return %arg0, %c0_i32, %c0_i32_0 : i32, i32, i32
  }
  func.func @transform_1(%arg0: i32) -> (i32, i32, i32) {
    %c0_i32 = arith.constant 0 : i32
    %c0_i32_0 = arith.constant 0 : i32
    %c0_i32_1 = arith.constant 0 : i32
    %c0_i32_2 = arith.constant 0 : i32
    return %c0_i32, %c0_i32_0, %c0_i32_1 : i32, i32, i32
  }
  func.func @transform_2(%arg0: i32) -> (i32, i32) {
    %c0_i32 = arith.constant 0 : i32
    %c0_i32_0 = arith.constant 0 : i32
    %c0_i32_1 = arith.constant 0 : i32
    return %c0_i32, %c0_i32_0 : i32, i32
  }
  func.func @transform_3(%arg0: i32) -> (i32, i32) {
    %c0_i32 = arith.constant 0 : i32
    %c0_i32_0 = arith.constant 0 : i32
    return %arg0, %c0_i32 : i32, i32
  }
}

</mosaic_0001>

<llo_original>
// kernel: tile.8
$region0: #{tile.8}
  #allocation0 [shape = 's32[1]{0}', space=sflag, size = 0x4, scoped, tag = 'scoped memory for tile.8']
  %s0 = inlined_call_operand.vmem [shape: f32[8], index: 0, kind: input, shape index: {}]
  %s1 = inlined_call_operand.vmem [shape: f32[16,8], index: 1, kind: output, shape index: {}]
  // Predicated region
  $region2: #{tile.8} parent=0 // pred_check
    _
  $region3: #{tile.8} parent=0 // pred_check_branch
    %3 = sbr.rel (0) target = $region5
  $region4: #{tile.8} parent=0 // pred_region
    _
  $region5: #{tile.8} parent=0 // pred_fallthru
    _
  %v4 = vld [vmem:[%s0] ss:$0 sm:$0xff]
  %5 = vst [vmem:[%s1] sm:$0xff] %v4
  %s6 = scalar_lea.vmem %s1, 8
  %7 = vst [vmem:[%s6] sm:$0xff] %v4

// kernel: tile.9
$region0: #{tile.9}
  %s0 = inlined_call_operand.vmem [shape: f32[16,8], index: 0, kind: input, shape index: {}]
  %s1 = inlined_call_operand.vmem [shape: f32[1,128], index: 1, kind: output, shape index: {}]
  $region1: #{tile.9} parent=0
    #allocation0 [shape = 'u8[4096]{0}', space=vmem, size = 0x1000, scoped, tag = 'scoped mem for output reshape']
    %v2 = vld [vmem:[%s0] sm:$0x1]
    %vm3 = vcmask 64512
    %4 = vst.msk [vmem:[#allocation0] sm:$0x1] %vm3, %v2
    %s5 = scalar_lea.vmem %s0, 15
    %v6 = vld [vmem:[%s5] sm:$0x1]
    %7 = vrot.lane.b32.xlu0 %v6, 120
    %v8 = vpop.permute.xlu0 %7
    %vm9 = vcmask 1048512
    %10 = vst.msk [vmem:[#allocation0] sm:$0x1] %vm9, %v8
    %s11 = scalar_lea.vmem %s0, 14
    %v12 = vld [vmem:[%s11] sm:$0x1]
    %13 = vrot.lane.b32.xlu0 %v12, 112
    %v14 = vpop.permute.xlu0 %13
    %vm15 = vcmask 982912
    %16 = vst.msk [vmem:[#allocation0] sm:$0x1] %vm15, %v14
    %s17 = scalar_lea.vmem %s0, 13
    %v18 = vld [vmem:[%s17] sm:$0x1]
    %19 = vrot.lane.b32.xlu0 %v18, 104
    %v20 = vpop.permute.xlu0 %19
    %vm21 = vcmask 917312
    %22 = vst.msk [vmem:[#allocation0] sm:$0x1] %vm21, %v20
    %s23 = scalar_lea.vmem %s0, 12
    %v24 = vld [vmem:[%s23] sm:$0x1]
    %25 = vrot.lane.b32.xlu0 %v24, 96
    %v26 = vpop.permute.xlu0 %25
    %vm27 = vcmask 851712
    %28 = vst.msk [vmem:[#allocation0] sm:$0x1] %vm27, %v26
    %s29 = scalar_lea.vmem %s0, 11
    %v30 = vld [vmem:[%s29] sm:$0x1]
    %31 = vrot.lane.b32.xlu0 %v30, 88
    %v32 = vpop.permute.xlu0 %31
    %vm33 = vcmask 786112
    %34 = vst.msk [vmem:[#allocation0] sm:$0x1] %vm33, %v32
    %s35 = scalar_lea.vmem %s0, 10
    %v36 = vld [vmem:[%s35] sm:$0x1]
    %37 = vrot.lane.b32.xlu0 %v36, 80
    %v38 = vpop.permute.xlu0 %37
    %vm39 = vcmask 720512
    %40 = vst.msk [vmem:[#allocation0] sm:$0x1] %vm39, %v38
    %s41 = scalar_lea.vmem %s0, 9
    %v42 = vld [vmem:[%s41] sm:$0x1]
    %43 = vrot.lane.b32.xlu0 %v42, 72
    %v44 = vpop.permute.xlu0 %43
    %vm45 = vcmask 654912
    %46 = vst.msk [vmem:[#allocation0] sm:$0x1] %vm45, %v44
    %s47 = scalar_lea.vmem %s0, 8
    %v48 = vld [vmem:[%s47] sm:$0x1]
    %49 = vrot.lane.b32.xlu0 %v48, 64
    %v50 = vpop.permute.xlu0 %49
    %vm51 = vcmask 589312
    %52 = vst.msk [vmem:[#allocation0] sm:$0x1] %vm51, %v50
    %s53 = scalar_lea.vmem %s0, 7
    %v54 = vld [vmem:[%s53] sm:$0x1]
    %55 = vrot.lane.b32.xlu0 %v54, 56
    %v56 = vpop.permute.xlu0 %55
    %vm57 = vcmask 523712
    %58 = vst.msk [vmem:[#allocation0] sm:$0x1] %vm57, %v56
    %s59 = scalar_lea.vmem %s0, 6
    %v60 = vld [vmem:[%s59] sm:$0x1]
    %61 = vrot.lane.b32.xlu0 %v60, 48
    %v62 = vpop.permute.xlu0 %61
    %vm63 = vcmask 458112
    %64 = vst.msk [vmem:[#allocation0] sm:$0x1] %vm63, %v62
    %s65 = scalar_lea.vmem %s0, 5
    %v66 = vld [vmem:[%s65] sm:$0x1]
    %67 = vrot.lane.b32.xlu0 %v66, 40
    %v68 = vpop.permute.xlu0 %67
    %vm69 = vcmask 392512
    %70 = vst.msk [vmem:[#allocation0] sm:$0x1] %vm69, %v68
    %s71 = scalar_lea.vmem %s0, 4
    %v72 = vld [vmem:[%s71] sm:$0x1]
    %73 = vrot.lane.b32.xlu0 %v72, 32
    %v74 = vpop.permute.xlu0 %73
    %vm75 = vcmask 326912
    %76 = vst.msk [vmem:[#allocation0] sm:$0x1] %vm75, %v74
    %s77 = scalar_lea.vmem %s0, 3
    %v78 = vld [vmem:[%s77] sm:$0x1]
    %79 = vrot.lane.b32.xlu0 %v78, 24
    %v80 = vpop.permute.xlu0 %79
    %vm81 = vcmask 261312
    %82 = vst.msk [vmem:[#allocation0] sm:$0x1] %vm81, %v80
    %s83 = scalar_lea.vmem %s0, 2
    %v84 = vld [vmem:[%s83] sm:$0x1]
    %85 = vrot.lane.b32.xlu0 %v84, 16
    %v86 = vpop.permute.xlu0 %85
    %vm87 = vcmask 195712
    %88 = vst.msk [vmem:[#allocation0] sm:$0x1] %vm87, %v86
    %s89 = scalar_lea.vmem %s0, 1
    %v90 = vld [vmem:[%s89] sm:$0x1]
    %91 = vrot.lane.b32.xlu0 %v90, 8
    %v92 = vpop.permute.xlu0 %91
    %vm93 = vcmask 130112
    %94 = vst.msk [vmem:[#allocation0] sm:$0x1] %vm93, %v92
    %s96 = sshllo.u32 0, 1
    %v98 = vld [vmem:[#allocation0] sm:%s96]
    %s99 = sshllo.u32 0, 1
    %100 = vst [vmem:[%s1] sm:%s99] %v98

// kernel: shared_batch_ensemble_forward.1
$region0: #{shared_batch_ensemble_forward.1}
  #allocation0 [shape = 'u32[]', space=smem, size = 0x4, offset = 0x4, fixed_abs, tag = 'smem constant byte address 0x4 - core index']
  #allocation1 [shape = 'u32[144,128]{1,0:T(1,128)}', space=vmem, size = 0x12000, scoped, tag = 'internal scratch']
  #allocation2 [shape = 'f32[2,18,64]{2,1,0:T(8,128)}', space=vmem, size = 0x6000, scoped, tag = 'scratch operand']
  %s0 = inlined_call_operand.vmem [shape: f32[4,16,64], index: 0, kind: input, shape index: {}]
  %s1 = inlined_call_operand.vmem [shape: f32[3,64,128], index: 1, kind: input, shape index: {}]
  %s2 = inlined_call_operand.vmem [shape: f32[1,128], index: 2, kind: input, shape index: {}]
  %s3 = inlined_call_operand.vmem [shape: f32[64,128], index: 3, kind: output, shape index: {}]
  %s4 = sld [smem:[#allocation0]]
  $region45: #{shared_batch_ensemble_forward.1} parent=0
    _
  %s6 = ssub.s32 1, %s4
  %s7 = scalar_select 0, %s6, %s4
  loop: start=0, step=1, limit=4
  $region2: #{shared_batch_ensemble_forward.1} parent=0 // loop_pre_header
    _
  $region3: #{shared_batch_ensemble_forward.1} parent=0 // loop_header
    %s9 = sphi 0, %s13
    %p10 = scmp.ge.s32.totalorder %s9, 4
    %s19 = sphi 0, %s21
    %s22 = sphi 0, %s19
    %s23 = sphi 0, %s22
    %s39 = sphi 0, %s23
    %s43 = sphi 0, %s43
    %s45 = sphi 0, %s43
    %s46 = sphi 0, %s45
    %s60 = sphi 0, %s46
    %s64 = sphi 0, %s64
    %s66 = sphi 0, %s64
    %s67 = sphi 0, %s66
    %s81 = sphi 0, %s67
    %s87 = sphi 0, %s89
    %s90 = sphi 0, %s87
    %s91 = sphi 0, %s90
    %s107 = sphi 0, %s91
  $region4: #{shared_batch_ensemble_forward.1} parent=0 // loop_header_branch
    %12 = sbr.rel (%p10) target = $region8
  $region5: #{shared_batch_ensemble_forward.1} parent=0 // loop_body
    %s14 = ssub.s32 %s9, 1
    %s15 = ssub.s32 %s9, 2
    %s16 = sadd.s32 %s9, 1
    %s17 = ssub.s32 %s9, %s16
    %p18 = scmp.eq.s32.totalorder %s17, 0
    %s20 = sadd.s32 %s19, 1
    %s21 = scalar_select %p18, %s19, %s20
    %p24 = pneg %p18
    %p25 = scmp.eq.s32.totalorder %s9, 1
    %p26 = por %p24, %p25
    %p27 = scmp.ne.s32.totalorder %s19, %s22
    %p28 = scmp.eq.s32.totalorder %s9, 0
    %p29 = por %p27, %p28
    %p30 = scmp.ne.s32.totalorder %s19, %s22
    %p31 = scmp.eq.s32.totalorder %s14, 1
    %p32 = por %p30, %p31
    %p33 = scmp.ne.s32.totalorder %s22, %s23
    %p34 = scmp.eq.s32.totalorder %s14, 0
    %p35 = por %p33, %p34
    %p36 = scmp.ne.s32.totalorder %s22, %s23
    %p37 = scmp.eq.s32.totalorder %s15, 1
    %p38 = por %p36, %p37
    %p40 = scmp.ne.s32.totalorder %s23, %s39
    %p41 = scmp.eq.s32.totalorder %s15, 0
    %p42 = por %p40, %p41
    %s44 = sadd.s32 %s43, 1
    %p47 = scmp.eq.s32.totalorder %s9, 1
    %p48 = scmp.ne.s32.totalorder %s43, %s45
    %p49 = scmp.eq.s32.totalorder %s9, 0
    %p50 = por %p48, %p49
    %p51 = scmp.ne.s32.totalorder %s43, %s45
    %p52 = scmp.eq.s32.totalorder %s14, 1
    %p53 = por %p51, %p52
    %p54 = scmp.ne.s32.totalorder %s45, %s46
    %p55 = scmp.eq.s32.totalorder %s14, 0
    %p56 = por %p54, %p55
    %p57 = scmp.ne.s32.totalorder %s45, %s46
    %p58 = scmp.eq.s32.totalorder %s15, 1
    %p59 = por %p57, %p58
    %p61 = scmp.ne.s32.totalorder %s46, %s60
    %p62 = scmp.eq.s32.totalorder %s15, 0
    %p63 = por %p61, %p62
    %s65 = sadd.s32 %s64, 1
    %p68 = scmp.eq.s32.totalorder %s9, 1
    %p69 = scmp.ne.s32.totalorder %s64, %s66
    %p70 = scmp.eq.s32.totalorder %s9, 0
    %p71 = por %p69, %p70
    %p72 = scmp.ne.s32.totalorder %s64, %s66
    %p73 = scmp.eq.s32.totalorder %s14, 1
    %p74 = por %p72, %p73
    %p75 = scmp.ne.s32.totalorder %s66, %s67
    %p76 = scmp.eq.s32.totalorder %s14, 0
    %p77 = por %p75, %p76
    %p78 = scmp.ne.s32.totalorder %s66, %s67
    %p79 = scmp.eq.s32.totalorder %s15, 1
    %p80 = por %p78, %p79
    %p82 = scmp.ne.s32.totalorder %s67, %s81
    %p83 = scmp.eq.s32.totalorder %s15, 0
    %p84 = por %p82, %p83
    %s85 = ssub.s32 %s9, %s16
    %p86 = scmp.eq.s32.totalorder %s85, 0
    %s88 = sadd.s32 %s87, 1
    %s89 = scalar_select %p86, %s87, %s88
    %p92 = pneg %p86
    %p93 = scmp.eq.s32.totalorder %s9, 1
    %p94 = por %p92, %p93
    %p95 = scmp.ne.s32.totalorder %s87, %s90
    %p96 = scmp.eq.s32.totalorder %s9, 0
    %p97 = por %p95, %p96
    %p98 = scmp.ne.s32.totalorder %s87, %s90
    %p99 = scmp.eq.s32.totalorder %s14, 1
    %p100 = por %p98, %p99
    %p101 = scmp.ne.s32.totalorder %s90, %s91
    %p102 = scmp.eq.s32.totalorder %s14, 0
    %p103 = por %p101, %p102
    %p104 = scmp.ne.s32.totalorder %s90, %s91
    %p105 = scmp.eq.s32.totalorder %s15, 1
    %p106 = por %p104, %p105
    %p108 = scmp.ne.s32.totalorder %s91, %s107
    %p109 = scmp.eq.s32.totalorder %s15, 0
    %p110 = por %p108, %p109
    %p111 = scmp.le.s32.totalorder 1, %s9
    %p112 = scmp.lt.s32.totalorder %s9, 3
    %p113 = pnand %p111, %p112
    %p114 = pneg %p113
    // Predicated region
    $region9: #{shared_batch_ensemble_forward.1} parent=5 // pred_check
      _
    $region10: #{shared_batch_ensemble_forward.1} parent=5 // pred_check_branch
      %116 = sbr.rel (%p113) target = $region12
    $region11: #{shared_batch_ensemble_forward.1} parent=5 // pred_region
      %s117 = ssub.s32 %s9, 1
      // Predicated region
      $region13: #{shared_batch_ensemble_forward.1} parent=11 // pred_check
        %p118 = pneg %p56
      $region14: #{shared_batch_ensemble_forward.1} parent=11 // pred_check_branch
        %120 = sbr.rel (%p118) target = $region16
      $region15: #{shared_batch_ensemble_forward.1} parent=11 // pred_region
        _
      $region16: #{shared_batch_ensemble_forward.1} parent=11 // pred_fallthru
        _
      // Predicated region
      $region17: #{shared_batch_ensemble_forward.1} parent=11 // pred_check
        %p121 = pneg %p77
      $region18: #{shared_batch_ensemble_forward.1} parent=11 // pred_check_branch
        %123 = sbr.rel (%p121) target = $region20
      $region19: #{shared_batch_ensemble_forward.1} parent=11 // pred_region
        _
      $region20: #{shared_batch_ensemble_forward.1} parent=11 // pred_fallthru
        _
    $region12: #{shared_batch_ensemble_forward.1} parent=5 // pred_fallthru
      _
    %p124 = scmp.lt.s32.totalorder %s9, 2
    // Predicated region
    $region21: #{shared_batch_ensemble_forward.1} parent=5 // pred_check
      %p125 = pneg %p124
    $region22: #{shared_batch_ensemble_forward.1} parent=5 // pred_check_branch
      %127 = sbr.rel (%p125) target = $region24
    $region23: #{shared_batch_ensemble_forward.1} parent=5 // pred_region
      // Predicated region
      $region25: #{shared_batch_ensemble_forward.1} parent=23 // pred_check
        %p128 = pneg %p29
      $region26: #{shared_batch_ensemble_forward.1} parent=23 // pred_check_branch
        %130 = sbr.rel (%p128) target = $region28
      $region27: #{shared_batch_ensemble_forward.1} parent=23 // pred_region
        %s131 = smul.u32 2, %s9
        %p132 = scmp.lt.s32.totalorder %s131, 3
        %s133 = scalar_select %p132, %s131, 3
        %s134 = smul.addr %s133, 2
        %s135 = smul.addr %s134, 8
        %s136 = scalar_lea.vmem %s0, %s135
        %s137 = smul.u32 2, %s9
      $region28: #{shared_batch_ensemble_forward.1} parent=23 // pred_fallthru
        _
    $region24: #{shared_batch_ensemble_forward.1} parent=5 // pred_fallthru
      _
    %p138 = scmp.le.s32.totalorder 1, %s9
    %p139 = scmp.lt.s32.totalorder %s9, 3
    %p140 = pnand %p138, %p139
    %p141 = pneg %p140
    // Predicated region
    $region29: #{shared_batch_ensemble_forward.1} parent=5 // pred_check
      _
    $region30: #{shared_batch_ensemble_forward.1} parent=5 // pred_check_branch
      %143 = sbr.rel (%p140) target = $region32
    $region31: #{shared_batch_ensemble_forward.1} parent=5 // pred_region
      %s144 = ssub.s32 %s9, 1
      %s145 = smul.u32 2, %s14
      %p146 = scmp.lt.s32.totalorder %s145, 3
      %s147 = scalar_select %p146, %s145, 3
      %s148 = smul.addr %s147, 2
      %s149 = smul.addr %s148, 8
      %s150 = scalar_lea.vmem %s0, %s149
      %p151 = pneg %p35
      %p152 = pneg %p32
      %p153 = pneg %p56
      %p154 = pneg %p53
      %p155 = pneg %p77
      %p156 = pneg %p74
      %p157 = pneg %p103
      %p158 = pneg %p100
      %s159 = smul.u32 4, %s14
      %p160 = scmp.lt.s32.totalorder %s159, 7
      %s161 = scalar_select %p160, %s159, 7
      %s162 = smul.addr %s161, 8
      %s163 = scalar_lea.vmem %s3, %s162
      %s164 = smul.u32 2, %s14
      %p165 = scmp.lt.s32.totalorder %s164, 3
      %s166 = scalar_select %p165, %s164, 3
      %s167 = smul.addr %s166, 2
      %s168 = smul.addr %s167, 8
      %s169 = scalar_lea.vmem %s0, %s168
      %s170 = smul.u32 2, %s14
      %s171 = smul.u32 4, %s14
      %p172 = scmp.lt.s32.totalorder %s171, 7
      %s173 = scalar_select %p172, %s171, 7
      %s174 = smul.addr %s173, 8
      %s175 = scalar_lea.vmem %s3, %s174
      %s176 = smul.u32 4, %s14
      %vm177 = vcmask 523264
      %178 = vst.msk [vmem:[#allocation2] sm:$0xff] %vm177, 0.0
      %179 = vst.msk [vmem:[#allocation2 + $0x8] sm:$0xff] %vm177, 0.0
      %vm180 = vcmask 517120
      %181 = vst.msk [vmem:[#allocation2 + $0x10] sm:$0x3] %vm180, 0.0
      %182 = vst.msk [vmem:[#allocation2 + $0x18] sm:$0xff] %vm177, 0.0
      %183 = vst.msk [vmem:[#allocation2 + $0x20] sm:$0xff] %vm177, 0.0
      %184 = vst.msk [vmem:[#allocation2 + $0x28] sm:$0x3] %vm180, 0.0
      %v185 = vld [vmem:[%s169] sm:$0xff]
      %v186 = vld [vmem:[%s169 + $0x8] sm:$0xff]
      %v187 = vld [vmem:[%s169 + $0x10] sm:$0xff]
      %v188 = vld [vmem:[%s169 + $0x18] sm:$0xff]
      %189 = vst.msk [vmem:[#allocation2 + $0x1] sm:$0xff] %vm177, %v185
      %190 = vst.msk [vmem:[#allocation2 + $0x9] sm:$0xff] %vm177, %v186
      %191 = vst.msk [vmem:[#allocation2 + $0x19] sm:$0xff] %vm177, %v187
      %192 = vst.msk [vmem:[#allocation2 + $0x21] sm:$0xff] %vm177, %v188
      %v193 = vld [vmem:[%s2] sm:$0x1]
      %v195 = vlaneseq
      %v196 = vshrl.u32 %v195, 7
      %v197 = vsub.s32 0, %v196
      %v198 = vrot.slane %v193, %v197
      %v200 = vld [vmem:[#allocation2] sm:$0xff]
      %v201 = vld [vmem:[#allocation2 + $0x8] sm:$0xff]
      %v202 = vld [vmem:[#allocation2 + $0x18] sm:$0xff]
      %v203 = vld [vmem:[#allocation2 + $0x20] sm:$0xff]
      %v204 = vld [vmem:[%s1] sm:$0xff]
      %v205 = vld [vmem:[%s1 + $0x8] sm:$0xff]
      %v206 = vld [vmem:[%s1 + $0x10] sm:$0xff]
      %v207 = vld [vmem:[%s1 + $0x18] sm:$0xff]
      %v208 = vld [vmem:[%s1 + $0x20] sm:$0xff]
      %v209 = vld [vmem:[%s1 + $0x28] sm:$0xff]
      %v210 = vld [vmem:[%s1 + $0x30] sm:$0xff]
      %v211 = vld [vmem:[%s1 + $0x38] sm:$0xff]
      %v213 = vsel %vm177, %v200, 0
      %v216 = vsel %vm177, %v201, 0
      %v219 = vsel %vm177, %v202, 0
      %v222 = vsel %vm177, %v203, 0
      %224 = vmatprep.subr.mxu0 0.0
      %225 = vmatpush1.msra.mxu0 %v204
      %226 = vmatprep.subr.mxu0 0.0
      %227 = vmatpush1.msra.mxu0 %v205
      %228 = vmatprep.subr.mxu0 0.0
      %229 = vmatpush1.msra.mxu0 %v206
      %230 = vmatprep.subr.mxu0 0.0
      %231 = vmatpush1.msra.mxu0 %v207
      %232 = vmatprep.subr.mxu0 0.0
      %233 = vmatpush1.msra.mxu0 %v208
      %234 = vmatprep.subr.mxu0 0.0
      %235 = vmatpush1.msra.mxu0 %v209
      %236 = vmatprep.subr.mxu0 0.0
      %237 = vmatpush1.msra.mxu0 %v210
      %238 = vmatprep.subr.mxu0 0.0
      %239 = vmatpush1.msra.mxu0 %v211
      %240 = vmatprep.subr.mxu0 0.0
      %241 = vmatpush1.msra.mxu0 0.0
      %242 = vmatprep.subr.mxu0 0.0
      %243 = vmatpush1.msra.mxu0 0.0
      %244 = vmatprep.subr.mxu0 0.0
      %245 = vmatpush1.msra.mxu0 0.0
      %246 = vmatprep.subr.mxu0 0.0
      %247 = vmatpush1.msra.mxu0 0.0
      %248 = vmatprep.subr.mxu0 0.0
      %249 = vmatpush1.msra.mxu0 0.0
      %250 = vmatprep.subr.mxu0 0.0
      %251 = vmatpush1.msra.mxu0 0.0
      %252 = vmatprep.subr.mxu0 0.0
      %253 = vmatpush1.msra.mxu0 0.0
      %254 = vmatprep.subr.mxu0 0.0
      %255 = vmatpush1.msra.mxu0 0.0
      %256 = vmatprep.subr.mxu0 0.0
      %257 = vmatpush1.msra.mxu0 0.0
      %258 = vmatprep.subr.mxu0 0.0
      %259 = vmatpush1.msra.mxu0 0.0
      %260 = vmatprep.subr.mxu0 0.0
      %261 = vmatpush1.msra.mxu0 0.0
      %262 = vmatprep.subr.mxu0 0.0
      %263 = vmatpush1.msra.mxu0 0.0
      %264 = vmatprep.subr.mxu0 0.0
      %265 = vmatpush1.msra.mxu0 0.0
      %266 = vmatprep.subr.mxu0 0.0
      %267 = vmatpush1.msra.mxu0 0.0
      %268 = vmatprep.subr.mxu0 0.0
      %269 = vmatpush1.msra.mxu0 0.0
      %270 = vmatprep.subr.mxu0 0.0
      %271 = vmatpush1.msra.mxu0 0.0
      %272 = vmatprep.subr.mxu0 0.0
      %273 = vmatpush1.msra.mxu0 0.0
      %274 = vmatprep.subr.mxu0 0.0
      %275 = vmatpush1.msra.mxu0 0.0
      %276 = vmatprep.subr.mxu0 0.0
      %277 = vmatpush1.msra.mxu0 0.0
      %278 = vmatprep.subr.mxu0 0.0
      %279 = vmatpush1.msra.mxu0 0.0
      %280 = vmatprep.subr.mxu0 0.0
      %281 = vmatpush1.msra.mxu0 0.0
      %282 = vmatprep.subr.mxu0 0.0
      %283 = vmatpush1.msra.mxu0 0.0
      %284 = vmatprep.subr.mxu0 0.0
      %285 = vmatpush1.msra.mxu0 0.0
      %286 = vmatprep.subr.mxu0 0.0
      %287 = vmatpush1.msra.mxu0 0.0
      %288 = vmatprep.mubr.f32.mxu0 0.0
      %289 = vmatmul.mubr.f32.gmra.mrb[0].mxu0 %v213
      %v290 = vpop.f32.mrb[0].mxu0
      %v291 = vadd.f32 0.0, %v290
      %v292 = vpop.f32.mrb[0].mxu0
      %293 = vmatprep.mubr.f32.mxu0 0.0
      %294 = vmatmul.mubr.f32.gmra.mrb[0].mxu0 %v216
      %v295 = vpop.f32.mrb[0].mxu0
      %v296 = vadd.f32 0.0, %v295
      %v297 = vpop.f32.mrb[0].mxu0
      %298 = vmatprep.mubr.f32.mxu0 0.0
      %299 = vmatmul.mubr.f32.gmra.mrb[0].mxu0 %v219
      %v300 = vpop.f32.mrb[0].mxu0
      %v301 = vadd.f32 0.0, %v300
      %v302 = vpop.f32.mrb[0].mxu0
      %303 = vmatprep.mubr.f32.mxu0 0.0
      %304 = vmatmul.mubr.f32.gmra.mrb[0].mxu0 %v222
      %v305 = vpop.f32.mrb[0].mxu0
      %v306 = vadd.f32 0.0, %v305
      %v307 = vpop.f32.mrb[0].mxu0
      %308 = vdwg.mxu0
      %v309 = vadd.f32 %v198, %v291
      %v310 = vadd.f32 %v198, %v296
      %v311 = vadd.f32 %v198, %v301
      %v312 = vadd.f32 %v198, %v306
      %v313 = vld [vmem:[#allocation2 + $0x1] sm:$0xff]
      %v314 = vld [vmem:[#allocation2 + $0x9] sm:$0xff]
      %v315 = vld [vmem:[#allocation2 + $0x19] sm:$0xff]
      %v316 = vld [vmem:[#allocation2 + $0x21] sm:$0xff]
      %s317 = scalar_lea.vmem %s1, 64
      %v318 = vld [vmem:[%s317] sm:$0xff]
      %v319 = vld [vmem:[%s317 + $0x8] sm:$0xff]
      %v320 = vld [vmem:[%s317 + $0x10] sm:$0xff]
      %v321 = vld [vmem:[%s317 + $0x18] sm:$0xff]
      %v322 = vld [vmem:[%s317 + $0x20] sm:$0xff]
      %v323 = vld [vmem:[%s317 + $0x28] sm:$0xff]
      %v324 = vld [vmem:[%s317 + $0x30] sm:$0xff]
      %v325 = vld [vmem:[%s317 + $0x38] sm:$0xff]
      %v327 = vsel %vm177, %v313, 0
      %v330 = vsel %vm177, %v314, 0
      %v333 = vsel %vm177, %v315, 0
      %v336 = vsel %vm177, %v316, 0
      %338 = vmatprep.subr.mxu0 0.0
      %339 = vmatpush1.msra.mxu0 %v318
      %340 = vmatprep.subr.mxu0 0.0
      %341 = vmatpush1.msra.mxu0 %v319
      %342 = vmatprep.subr.mxu0 0.0
      %343 = vmatpush1.msra.mxu0 %v320
      %344 = vmatprep.subr.mxu0 0.0
      %345 = vmatpush1.msra.mxu0 %v321
      %346 = vmatprep.subr.mxu0 0.0
      %347 = vmatpush1.msra.mxu0 %v322
      %348 = vmatprep.subr.mxu0 0.0
      %349 = vmatpush1.msra.mxu0 %v323
      %350 = vmatprep.subr.mxu0 0.0
      %351 = vmatpush1.msra.mxu0 %v324
      %352 = vmatprep.subr.mxu0 0.0
      %353 = vmatpush1.msra.mxu0 %v325
      %354 = vmatprep.subr.mxu0 0.0
      %355 = vmatpush1.msra.mxu0 0.0
      %356 = vmatprep.subr.mxu0 0.0
      %357 = vmatpush1.msra.mxu0 0.0
      %358 = vmatprep.subr.mxu0 0.0
      %359 = vmatpush1.msra.mxu0 0.0
      %360 = vmatprep.subr.mxu0 0.0
      %361 = vmatpush1.msra.mxu0 0.0
      %362 = vmatprep.subr.mxu0 0.0
      %363 = vmatpush1.msra.mxu0 0.0
      %364 = vmatprep.subr.mxu0 0.0
      %365 = vmatpush1.msra.mxu0 0.0
      %366 = vmatprep.subr.mxu0 0.0
      %367 = vmatpush1.msra.mxu0 0.0
      %368 = vmatprep.subr.mxu0 0.0
      %369 = vmatpush1.msra.mxu0 0.0
      %370 = vmatprep.subr.mxu0 0.0
      %371 = vmatpush1.msra.mxu0 0.0
      %372 = vmatprep.subr.mxu0 0.0
      %373 = vmatpush1.msra.mxu0 0.0
      %374 = vmatprep.subr.mxu0 0.0
      %375 = vmatpush1.msra.mxu0 0.0
      %376 = vmatprep.subr.mxu0 0.0
      %377 = vmatpush1.msra.mxu0 0.0
      %378 = vmatprep.subr.mxu0 0.0
      %379 = vmatpush1.msra.mxu0 0.0
      %380 = vmatprep.subr.mxu0 0.0
      %381 = vmatpush1.msra.mxu0 0.0
      %382 = vmatprep.subr.mxu0 0.0
      %383 = vmatpush1.msra.mxu0 0.0
      %384 = vmatprep.subr.mxu0 0.0
      %385 = vmatpush1.msra.mxu0 0.0
      %386 = vmatprep.subr.mxu0 0.0
      %387 = vmatpush1.msra.mxu0 0.0
      %388 = vmatprep.subr.mxu0 0.0
      %389 = vmatpush1.msra.mxu0 0.0
      %390 = vmatprep.subr.mxu0 0.0
      %391 = vmatpush1.msra.mxu0 0.0
      %392 = vmatprep.subr.mxu0 0.0
      %393 = vmatpush1.msra.mxu0 0.0
      %394 = vmatprep.subr.mxu0 0.0
      %395 = vmatpush1.msra.mxu0 0.0
      %396 = vmatprep.subr.mxu0 0.0
      %397 = vmatpush1.msra.mxu0 0.0
      %398 = vmatprep.subr.mxu0 0.0
      %399 = vmatpush1.msra.mxu0 0.0
      %400 = vmatprep.subr.mxu0 0.0
      %401 = vmatpush1.msra.mxu0 0.0
      %402 = vmatprep.mubr.f32.mxu0 0.0
      %403 = vmatmul.mubr.f32.gmra.mrb[0].mxu0 %v327
      %v404 = vpop.f32.mrb[0].mxu0
      %v405 = vadd.f32 0.0, %v404
      %v406 = vpop.f32.mrb[0].mxu0
      %407 = vmatprep.mubr.f32.mxu0 0.0
      %408 = vmatmul.mubr.f32.gmra.mrb[0].mxu0 %v330
      %v409 = vpop.f32.mrb[0].mxu0
      %v410 = vadd.f32 0.0, %v409
      %v411 = vpop.f32.mrb[0].mxu0
      %412 = vmatprep.mubr.f32.mxu0 0.0
      %413 = vmatmul.mubr.f32.gmra.mrb[0].mxu0 %v333
      %v414 = vpop.f32.mrb[0].mxu0
      %v415 = vadd.f32 0.0, %v414
      %v416 = vpop.f32.mrb[0].mxu0
      %417 = vmatprep.mubr.f32.mxu0 0.0
      %418 = vmatmul.mubr.f32.gmra.mrb[0].mxu0 %v336
      %v419 = vpop.f32.mrb[0].mxu0
      %v420 = vadd.f32 0.0, %v419
      %v421 = vpop.f32.mrb[0].mxu0
      %422 = vdwg.mxu0
      %v423 = vadd.f32 %v309, %v405
      %v424 = vadd.f32 %v310, %v410
      %v425 = vadd.f32 %v311, %v415
      %v426 = vadd.f32 %v312, %v420
      %v427 = vld [vmem:[#allocation2 + $0x2] sm:$0xff]
      %v428 = vld [vmem:[#allocation2 + $0xa] sm:$0xff]
      %v429 = vld [vmem:[#allocation2 + $0x1a] sm:$0xff]
      %v430 = vld [vmem:[#allocation2 + $0x22] sm:$0xff]
      %s431 = scalar_lea.vmem %s1, 128
      %v432 = vld [vmem:[%s431] sm:$0xff]
      %v433 = vld [vmem:[%s431 + $0x8] sm:$0xff]
      %v434 = vld [vmem:[%s431 + $0x10] sm:$0xff]
      %v435 = vld [vmem:[%s431 + $0x18] sm:$0xff]
      %v436 = vld [vmem:[%s431 + $0x20] sm:$0xff]
      %v437 = vld [vmem:[%s431 + $0x28] sm:$0xff]
      %v438 = vld [vmem:[%s431 + $0x30] sm:$0xff]
      %v439 = vld [vmem:[%s431 + $0x38] sm:$0xff]
      %v441 = vsel %vm177, %v427, 0
      %v444 = vsel %vm177, %v428, 0
      %v447 = vsel %vm177, %v429, 0
      %v450 = vsel %vm177, %v430, 0
      %452 = vmatprep.subr.mxu0 0.0
      %453 = vmatpush1.msra.mxu0 %v432
      %454 = vmatprep.subr.mxu0 0.0
      %455 = vmatpush1.msra.mxu0 %v433
      %456 = vmatprep.subr.mxu0 0.0
      %457 = vmatpush1.msra.mxu0 %v434
      %458 = vmatprep.subr.mxu0 0.0
      %459 = vmatpush1.msra.mxu0 %v435
      %460 = vmatprep.subr.mxu0 0.0
      %461 = vmatpush1.msra.mxu0 %v436
      %462 = vmatprep.subr.mxu0 0.0
      %463 = vmatpush1.msra.mxu0 %v437
      %464 = vmatprep.subr.mxu0 0.0
      %465 = vmatpush1.msra.mxu0 %v438
      %466 = vmatprep.subr.mxu0 0.0
      %467 = vmatpush1.msra.mxu0 %v439
      %468 = vmatprep.subr.mxu0 0.0
      %469 = vmatpush1.msra.mxu0 0.0
      %470 = vmatprep.subr.mxu0 0.0
      %471 = vmatpush1.msra.mxu0 0.0
      %472 = vmatprep.subr.mxu0 0.0
      %473 = vmatpush1.msra.mxu0 0.0
      %474 = vmatprep.subr.mxu0 0.0
      %475 = vmatpush1.msra.mxu0 0.0
      %476 = vmatprep.subr.mxu0 0.0
      %477 = vmatpush1.msra.mxu0 0.0
      %478 = vmatprep.subr.mxu0 0.0
      %479 = vmatpush1.msra.mxu0 0.0
      %480 = vmatprep.subr.mxu0 0.0
      %481 = vmatpush1.msra.mxu0 0.0
      %482 = vmatprep.subr.mxu0 0.0
      %483 = vmatpush1.msra.mxu0 0.0
      %484 = vmatprep.subr.mxu0 0.0
      %485 = vmatpush1.msra.mxu0 0.0
      %486 = vmatprep.subr.mxu0 0.0
      %487 = vmatpush1.msra.mxu0 0.0
      %488 = vmatprep.subr.mxu0 0.0
      %489 = vmatpush1.msra.mxu0 0.0
      %490 = vmatprep.subr.mxu0 0.0
      %491 = vmatpush1.msra.mxu0 0.0
      %492 = vmatprep.subr.mxu0 0.0
      %493 = vmatpush1.msra.mxu0 0.0
      %494 = vmatprep.subr.mxu0 0.0
      %495 = vmatpush1.msra.mxu0 0.0
      %496 = vmatprep.subr.mxu0 0.0
      %497 = vmatpush1.msra.mxu0 0.0
      %498 = vmatprep.subr.mxu0 0.0
      %499 = vmatpush1.msra.mxu0 0.0
      %500 = vmatprep.subr.mxu0 0.0
      %501 = vmatpush1.msra.mxu0 0.0
      %502 = vmatprep.subr.mxu0 0.0
      %503 = vmatpush1.msra.mxu0 0.0
      %504 = vmatprep.subr.mxu0 0.0
      %505 = vmatpush1.msra.mxu0 0.0
      %506 = vmatprep.subr.mxu0 0.0
      %507 = vmatpush1.msra.mxu0 0.0
      %508 = vmatprep.subr.mxu0 0.0
      %509 = vmatpush1.msra.mxu0 0.0
      %510 = vmatprep.subr.mxu0 0.0
      %511 = vmatpush1.msra.mxu0 0.0
      %512 = vmatprep.subr.mxu0 0.0
      %513 = vmatpush1.msra.mxu0 0.0
      %514 = vmatprep.subr.mxu0 0.0
      %515 = vmatpush1.msra.mxu0 0.0
      %516 = vmatprep.mubr.f32.mxu0 0.0
      %517 = vmatmul.mubr.f32.gmra.mrb[0].mxu0 %v441
      %v518 = vpop.f32.mrb[0].mxu0
      %v519 = vadd.f32 0.0, %v518
      %v520 = vpop.f32.mrb[0].mxu0
      %521 = vmatprep.mubr.f32.mxu0 0.0
      %522 = vmatmul.mubr.f32.gmra.mrb[0].mxu0 %v444
      %v523 = vpop.f32.mrb[0].mxu0
      %v524 = vadd.f32 0.0, %v523
      %v525 = vpop.f32.mrb[0].mxu0
      %526 = vmatprep.mubr.f32.mxu0 0.0
      %527 = vmatmul.mubr.f32.gmra.mrb[0].mxu0 %v447
      %v528 = vpop.f32.mrb[0].mxu0
      %v529 = vadd.f32 0.0, %v528
      %v530 = vpop.f32.mrb[0].mxu0
      %531 = vmatprep.mubr.f32.mxu0 0.0
      %532 = vmatmul.mubr.f32.gmra.mrb[0].mxu0 %v450
      %v533 = vpop.f32.mrb[0].mxu0
      %v534 = vadd.f32 0.0, %v533
      %v535 = vpop.f32.mrb[0].mxu0
      %536 = vdwg.mxu0
      %v537 = vadd.f32 %v423, %v519
      %v538 = vadd.f32 %v424, %v524
      %v539 = vadd.f32 %v425, %v529
      %v540 = vadd.f32 %v426, %v534
      %541 = vst [vmem:[%s175] sm:$0xff] %v537
      %542 = vst [vmem:[%s175 + $0x8] sm:$0xff] %v538
      %543 = vst [vmem:[%s175 + $0x10] sm:$0xff] %v539
      %544 = vst [vmem:[%s175 + $0x18] sm:$0xff] %v540
      %s545 = smul.u32 4, %s14
      %p546 = scmp.lt.s32.totalorder %s545, 7
      %s547 = scalar_select %p546, %s545, 7
      %s548 = smul.addr %s547, 8
      %s549 = scalar_lea.vmem %s3, %s548
      // Predicated region
      $region33: #{shared_batch_ensemble_forward.1} parent=31 // pred_check
        %p550 = pneg %p100
      $region34: #{shared_batch_ensemble_forward.1} parent=31 // pred_check_branch
        %552 = sbr.rel (%p550) target = $region36
      $region35: #{shared_batch_ensemble_forward.1} parent=31 // pred_region
        %s553 = smul.u32 4, %s14
      $region36: #{shared_batch_ensemble_forward.1} parent=31 // pred_fallthru
        _
    $region32: #{shared_batch_ensemble_forward.1} parent=5 // pred_fallthru
      _
    %p554 = scmp.le.s32.totalorder 2, %s9
    // Predicated region
    $region37: #{shared_batch_ensemble_forward.1} parent=5 // pred_check
      %p555 = pneg %p554
    $region38: #{shared_batch_ensemble_forward.1} parent=5 // pred_check_branch
      %557 = sbr.rel (%p555) target = $region40
    $region39: #{shared_batch_ensemble_forward.1} parent=5 // pred_region
      %s558 = ssub.s32 %s9, 2
      // Predicated region
      $region41: #{shared_batch_ensemble_forward.1} parent=39 // pred_check
        %p559 = pneg %p106
      $region42: #{shared_batch_ensemble_forward.1} parent=39 // pred_check_branch
        %561 = sbr.rel (%p559) target = $region44
      $region43: #{shared_batch_ensemble_forward.1} parent=39 // pred_region
        %s562 = smul.u32 4, %s15
        %p563 = scmp.lt.s32.totalorder %s562, 7
        %s564 = scalar_select %p563, %s562, 7
        %s565 = smul.addr %s564, 8
        %s566 = scalar_lea.vmem %s3, %s565
      $region44: #{shared_batch_ensemble_forward.1} parent=39 // pred_fallthru
        _
    $region40: #{shared_batch_ensemble_forward.1} parent=5 // pred_fallthru
      _
  $region6: #{shared_batch_ensemble_forward.1} parent=0 // loop_footer
    %s13 = sadd.s32 1, %s9
  $region7: #{shared_batch_ensemble_forward.1} parent=0 // loop_footer_branch
    %8 = sbr.rel target = $region3
  $region8: #{shared_batch_ensemble_forward.1} parent=0 // loop_exit
    _

</llo_original>
